<compile_context>
chip_gen: v5e
topology: v5e:2x2
jax: 0.10.0
libtpu: 0.0.40
codegen_flags: <defaults>
</compile_context>

<pallas_src>
import functools

import jax
import jax.numpy as jnp
from jax.experimental import pallas as pl
from jax.experimental.pallas import tpu as pltpu


# ---------------------------------------------------------------------------
# Tiled dense kernel: y = x @ w + b (optional ReLU).
# Grid over (M, N) tiles, bf16 MXU operands, f32 accumulation.
# ---------------------------------------------------------------------------
def _linear_kernel(x_ref, w_ref, b_ref, o_ref, *, relu):
    y = jnp.dot(x_ref[...].astype(jnp.bfloat16),
                w_ref[...].astype(jnp.bfloat16),
                preferred_element_type=jnp.float32) + b_ref[...]
    if relu:
        y = jnp.maximum(y, 0.0)
    o_ref[...] = y.astype(o_ref.dtype)


def _linear(x, w, b, *, relu=False, out_dtype=jnp.float32,
            block_m=512, block_n=512):
    M, K = x.shape
    N = w.shape[1]
    bm = min(block_m, M)
    bn = min(block_n, N)
    return pl.pallas_call(
        functools.partial(_linear_kernel, relu=relu),
        grid=(pl.cdiv(M, bm), pl.cdiv(N, bn)),
        in_specs=[
            pl.BlockSpec((bm, K), lambda i, j: (i, 0)),
            pl.BlockSpec((K, bn), lambda i, j: (0, j)),
            pl.BlockSpec((1, bn), lambda i, j: (0, j)),
        ],
        out_specs=pl.BlockSpec((bm, bn), lambda i, j: (i, j)),
        out_shape=jax.ShapeDtypeStruct((M, N), out_dtype),
        compiler_params=pltpu.CompilerParams(
            dimension_semantics=("parallel", "parallel"),
            vmem_limit_bytes=32 * 1024 * 1024),
    )(x, w, b.reshape(1, N).astype(jnp.float32))


# ---------------------------------------------------------------------------
# Bidirectional LSTM recurrence, streamed over time chunks.
#   grid = (direction d in {0:fwd, 1:bwd}, time-chunk i)
#   gates_ref : (tc, B, 4H) bf16   this direction's pre-activations (x@W_ih+b)
#   len_ref   : (B, 1)      int32  sequence lengths
#   whh_ref   : (H, 4H)     bf16   this direction's recurrent weights
#   out_ref   : (tc, B, H)  f32    this direction's half of the output columns
#   hfin/cfin : (1, B, H)   f32    final state of this direction
# Padded / out-of-range timesteps keep the previous state and emit 1.0
# (pack_padded_sequence + pad_packed_sequence(padding_value=1) semantics).
# ---------------------------------------------------------------------------
def _bilstm_kernel(gates_ref, len_ref, whh_ref, out_ref, hfin_ref, cfin_ref,
                   h_sc, c_sc, *, tc, H):
    d = pl.program_id(0)            # 0 = forward, 1 = backward
    i = pl.program_id(1)            # chunk index within this direction
    nc = pl.num_programs(1)

    @pl.when(i == 0)
    def _():
        h_sc[...] = jnp.zeros_like(h_sc)
        c_sc[...] = jnp.zeros_like(c_sc)

    lens = len_ref[...]                             # (B, 1) int32 (hoisted)
    whh = whh_ref[...]                              # (H, 4H) bf16 (hoisted)
    # Global time of local index 0 of this chunk (matches the BlockSpec maps:
    # fwd visits chunk i, bwd visits chunk nc-1-i).
    base = (i + d * (nc - 1 - 2 * i)) * tc

    def step(j, carry):
        h, c = carry
        local = j + d * (tc - 1 - 2 * j)            # fwd: j   bwd: tc-1-j
        t_glob = base + local

        g = gates_ref[local].astype(jnp.float32) + jnp.dot(
            h.astype(jnp.bfloat16), whh, preferred_element_type=jnp.float32)
        i_g = jax.nn.sigmoid(g[:, 0:H])
        f_g = jax.nn.sigmoid(g[:, H:2 * H])
        g_g = jnp.tanh(g[:, 2 * H:3 * H])
        o_g = jax.nn.sigmoid(g[:, 3 * H:4 * H])
        c_n = f_g * c + i_g * g_g
        h_n = o_g * jnp.tanh(c_n)

        valid = t_glob < lens                       # (B, 1) bool
        h = jnp.where(valid, h_n, h)
        c = jnp.where(valid, c_n, c)
        # Direct lane-dense store; pad_packed padding_value=1.0 fused in.
        out_ref[local] = jnp.where(valid, h_n, 1.0)
        return h, c

    h, c = jax.lax.fori_loop(0, tc, step, (h_sc[...], c_sc[...]), unroll=2)
    h_sc[...] = h
    c_sc[...] = c

    @pl.when(i == nc - 1)
    def _():
        hfin_ref[0] = h
        cfin_ref[0] = c


def _run_bilstm(gates, seq_lens, w_hh_both, *, time_chunk,
                vmem_limit_bytes=32 * 1024 * 1024):
    """gates: (T, B, 8H) bf16, columns [0:4H]=fwd, [4H:8H]=bwd. T % tc == 0."""
    T, B, G2 = gates.shape
    H = G2 // 8
    tc = time_chunk
    assert T % tc == 0
    nc = T // tc

    def chunk_ix(d, i):                 # fwd: i, bwd: nc-1-i
        return i + d * (nc - 1 - 2 * i)

    return pl.pallas_call(
        functools.partial(_bilstm_kernel, tc=tc, H=H),
        grid=(2, nc),
        in_specs=[
            pl.BlockSpec((tc, B, 4 * H), lambda d, i: (chunk_ix(d, i), 0, d)),
            pl.BlockSpec((B, 1), lambda d, i: (0, 0)),
            pl.BlockSpec((H, 4 * H), lambda d, i: (0, d)),
        ],
        out_specs=(
            pl.BlockSpec((tc, B, H), lambda d, i: (chunk_ix(d, i), 0, d)),
            pl.BlockSpec((1, B, H), lambda d, i: (d, 0, 0)),
            pl.BlockSpec((1, B, H), lambda d, i: (d, 0, 0)),
        ),
        out_shape=(
            jax.ShapeDtypeStruct((T, B, 2 * H), jnp.float32),   # bi outputs
            jax.ShapeDtypeStruct((2, B, H), jnp.float32),        # final h
            jax.ShapeDtypeStruct((2, B, H), jnp.float32),        # final c
        ),
        scratch_shapes=[
            pltpu.VMEM((B, H), jnp.float32),     # h carry (per core)
            pltpu.VMEM((B, H), jnp.float32),     # c carry (per core)
        ],
        compiler_params=pltpu.CompilerParams(
            # direction axis parallel -> 2-TC split on v7x; chunk axis serial.
            dimension_semantics=("parallel", "arbitrary"),
            vmem_limit_bytes=vmem_limit_bytes),
    )(gates, seq_lens.reshape(B, 1).astype(jnp.int32), w_hh_both)


# ---------------------------------------------------------------------------
# Parameter construction (deterministic, synthetic).  Matmul weights are
# stored in bf16 (MXU fast path, f32 accumulation); biases stay f32.
# ---------------------------------------------------------------------------
def init_params(key, input_size, emb_size, enc_hid_dim, dec_hid_dim):
    H, E = enc_hid_dim, emb_size
    ks = jax.random.split(key, 16)

    def rnd(k, shape, scale=0.1):
        return (scale * jax.random.normal(k, shape)).astype(jnp.float32)

    w_ih_f = rnd(ks[1], (E, 4 * H))
    w_ih_b = rnd(ks[5], (E, 4 * H))
    b_f = rnd(ks[3], (4 * H,)) + rnd(ks[4], (4 * H,))     # b_ih + b_hh (fwd)
    b_b = rnd(ks[7], (4 * H,)) + rnd(ks[8], (4 * H,))     # b_ih + b_hh (bwd)

    return dict(
        embedding=rnd(ks[0], (input_size, E)).astype(jnp.bfloat16),
        w_ih_both=jnp.concatenate([w_ih_f, w_ih_b], 1).astype(jnp.bfloat16),
        b_both=jnp.concatenate([b_f, b_b], 0),
        w_hh_both=jnp.concatenate([rnd(ks[2], (H, 4 * H)),
                                   rnd(ks[6], (H, 4 * H))], 1
                                  ).astype(jnp.bfloat16),
        w_reduce_h=rnd(ks[9], (2 * H, H)).astype(jnp.bfloat16),
        b_reduce_h=rnd(ks[10], (H,)),
        w_reduce_c=rnd(ks[11], (2 * H, H)).astype(jnp.bfloat16),
        b_reduce_c=rnd(ks[12], (H,)),
        w_out=rnd(ks[13], (2 * H, 2 * dec_hid_dim)).astype(jnp.bfloat16),
        b_out=rnd(ks[14], (2 * dec_hid_dim,)),
    )


# ---------------------------------------------------------------------------
# encoderRNN.forward equivalent.
#   tokens: (B, T) int32, seq_lens: (B,) int32 (sorted descending)
#   returns encoder_outputs (B, T, 2H), features (B*T, 2*dec_hid), (h, c)
# ---------------------------------------------------------------------------
def encoder_rnn_forward(params, tokens, seq_lens, enc_hid_dim, *,
                        time_chunk=8):
    B, T = tokens.shape
    H = enc_hid_dim
    tc = min(time_chunk, T)            # tune per generation / VMEM budget
    T_pad = -(-T // tc) * tc           # pad time to a chunk multiple
    B_pad = -(-B // 8) * 8             # sublane-pad batch (pad rows get len 0)

    # Gather embeddings already time-major: transpose the tiny index matrix,
    # not the activation slab.
    tok_t = jnp.pad(jnp.transpose(tokens.astype(jnp.int32)),
                    ((0, T_pad - T), (0, B_pad - B)))
    lens_p = jnp.pad(seq_lens.astype(jnp.int32), (0, B_pad - B))

    # TODO(synk): embedding gather stays in XLA (jnp.take); a Pallas DMA-gather
    # kernel is possible but not worthwhile at these sizes.
    emb = jnp.take(params['embedding'], tok_t, axis=0)      # (T_pad, B_pad, E)
    E = emb.shape[-1]

    # Hoisted input projection for BOTH directions (bias b_ih+b_hh folded in),
    # bf16 gates slab in time-major layout.
    gates2d = _linear(emb.reshape(T_pad * B_pad, E), params['w_ih_both'],
                      params['b_both'], out_dtype=jnp.bfloat16)
    gates = gates2d.reshape(T_pad, B_pad, 8 * H)

    out_tbd, h_fin, c_fin = _run_bilstm(gates, lens_p, params['w_hh_both'],
                                        time_chunk=tc)

    # TODO(synk): pad_packed truncates to max(seq_lens); we assume
    # max(seq_lens) == T.  The remaining (T,B,2H)->(B,T,2H) transpose could be
    # folded into the recurrence out_spec with a sublane-dynamic store.
    encoder_outputs = jnp.transpose(out_tbd[:T, :B], (1, 0, 2))   # (B, T, 2H)

    features = _linear(encoder_outputs.reshape(B * T, 2 * H),
                       params['w_out'], params['b_out'])

    # reduce_h / reduce_c + ReLU on the concatenated final states.
    h_cat = jnp.concatenate([h_fin[0, :B], h_fin[1, :B]], axis=-1)  # (B, 2H)
    c_cat = jnp.concatenate([c_fin[0, :B], c_fin[1, :B]], axis=-1)
    h_red = _linear(h_cat, params['w_reduce_h'], params['b_reduce_h'],
                    relu=True)
    c_red = _linear(c_cat, params['w_reduce_c'], params['b_reduce_c'],
                    relu=True)

    return encoder_outputs, features, (h_red[None], c_red[None])


if __name__ == "__main__":
    input_size, emb_size, enc_hid_dim, dec_hid_dim = 50, 64, 128, 128
    B, T = 2, 8

    key = jax.random.PRNGKey(0)
    pkey, tkey = jax.random.split(key)
    params = init_params(pkey, input_size, emb_size, enc_hid_dim, dec_hid_dim)

    tokens = jax.random.randint(tkey, (B, T), 0, input_size, dtype=jnp.int32)
    seq_lens = jnp.array([T, 5], dtype=jnp.int32)   # sorted desc, max == T

    enc_out, feats, (h, c) = encoder_rnn_forward(params, tokens, seq_lens,
                                                 enc_hid_dim, time_chunk=4)
    jax.block_until_ready((enc_out, feats, h, c))

    assert enc_out.shape == (B, T, 2 * enc_hid_dim)
    assert feats.shape == (B * T, 2 * dec_hid_dim)
    assert h.shape == (1, B, enc_hid_dim) and c.shape == (1, B, enc_hid_dim)
    print("KERNEL_OK")
</pallas_src>

<mosaic_0001>
module attributes {stable_mosaic.version = 11 : i64} {
  func.func @_linear_kernel(%arg0: i32, %arg1: i32, %arg2: memref<64x64xbf16, #tpu.memory_space<vmem>>, %arg3: memref<64x512xbf16, #tpu.memory_space<vmem>>, %arg4: memref<1x512xf32, #tpu.memory_space<vmem>>, %arg5: memref<64x512xbf16, #tpu.memory_space<vmem>>) attributes {dimension_semantics = [#tpu.dimension_semantics<parallel>, #tpu.dimension_semantics<parallel>], iteration_bounds = array<i64: 1, 2>, scalar_prefetch = 0 : i64, scratch_operands = 0 : i64, tpu.core_type = #tpu.core_type<tc>, window_params = [{transform_indices = @transform_0, window_bounds = array<i64: 64, 64>}, {transform_indices = @transform_1, window_bounds = array<i64: 64, 512>}, {transform_indices = @transform_2, window_bounds = array<i64: 1, 512>}, {transform_indices = @transform_3, window_bounds = array<i64: 64, 512>}]} {
    %c0 = arith.constant 0 : index
    %c0_0 = arith.constant 0 : index
    %0 = vector.load %arg2[%c0, %c0_0] : memref<64x64xbf16, #tpu.memory_space<vmem>>, vector<64x64xbf16>
    %c0_1 = arith.constant 0 : index
    %c0_2 = arith.constant 0 : index
    %1 = vector.load %arg3[%c0_1, %c0_2] : memref<64x512xbf16, #tpu.memory_space<vmem>>, vector<64x512xbf16>
    %cst = arith.constant dense<0.000000e+00> : vector<64x512xf32>
    %2 = tpu.matmul %0, %1, %cst {dimension_numbers = #tpu.dot_dimension_numbers<[1], [0], [0], [1], [0, 0, 1, 1], [], []>} : vector<64x64xbf16>, vector<64x512xbf16>, vector<64x512xf32> -> vector<64x512xf32>
    %c0_3 = arith.constant 0 : index
    %c0_4 = arith.constant 0 : index
    %3 = vector.load %arg4[%c0_3, %c0_4] : memref<1x512xf32, #tpu.memory_space<vmem>>, vector<1x512xf32>
    %4 = vector.broadcast %3 : vector<1x512xf32> to vector<64x512xf32>
    %5 = arith.addf %2, %4 : vector<64x512xf32>
    %6 = arith.truncf %5 : vector<64x512xf32> to vector<64x512xbf16>
    %c0_5 = arith.constant 0 : index
    %c0_6 = arith.constant 0 : index
    %7 = vector.load %arg5[%c0_5, %c0_6] : memref<64x512xbf16, #tpu.memory_space<vmem>>, vector<64x512xbf16>
    tpu.vector_store %arg5[%c0_5, %c0_6], %6 {strides = array<i32>} : memref<64x512xbf16, #tpu.memory_space<vmem>>, vector<64x512xbf16>,
    return
  }
  func.func @transform_0(%arg0: i32, %arg1: i32) -> (i32, i32) {
    %c0_i32 = arith.constant 0 : i32
    %c0_i32_0 = arith.constant 0 : i32
    return %arg0, %c0_i32 : i32, i32
  }
  func.func @transform_1(%arg0: i32, %arg1: i32) -> (i32, i32) {
    %c0_i32 = arith.constant 0 : i32
    %c0_i32_0 = arith.constant 0 : i32
    return %c0_i32, %arg1 : i32, i32
  }
  func.func @transform_2(%arg0: i32, %arg1: i32) -> (i32, i32) {
    %c0_i32 = arith.constant 0 : i32
    %c0_i32_0 = arith.constant 0 : i32
    return %c0_i32, %arg1 : i32, i32
  }
  func.func @transform_3(%arg0: i32, %arg1: i32) -> (i32, i32) {
    %c0_i32 = arith.constant 0 : i32
    return %arg0, %arg1 : i32, i32
  }
}

</mosaic_0001>

<llo_original>
// kernel: tpu_custom_call.1
$region0: #{tpu_custom_call.1}
  #allocation0 [shape = 'u32[]', space=smem, size = 0x4, offset = 0x4, fixed_abs, tag = 'smem constant byte address 0x4 - core index']
  #allocation1 [shape = 'u32[72,128]{1,0:T(1,128)}', space=vmem, size = 0x9000, scoped, tag = 'internal scratch']
  %s0 = inlined_call_operand.hbm [shape: bf16[64,64], index: 0, kind: input, shape index: {}]
  %s1 = inlined_call_operand.hbm [shape: bf16[64,1024], index: 1, kind: input, shape index: {}]
  %s2 = inlined_call_operand.hbm [shape: f32[1,1024], index: 2, kind: input, shape index: {}]
  %s3 = inlined_call_operand.hbm [shape: bf16[64,1024], index: 3, kind: output, shape index: {}]
  %s4 = sld [smem:[#allocation0]]
  $region57: #{tpu_custom_call.1} parent=0
    _
  %s6 = ssub.s32 1, %s4
  %s7 = scalar_select 0, %s6, %s4
  $region1: #{tpu_custom_call.1} parent=0
    #allocation2 [shape = 'u8[16384]{0}', space=vmem, size = 0x4000, scoped, tag = 'input window, operand 0, single buffered']
    #allocation3 [shape = 's32[2]{0}', space=sflag, size = 0x8, scoped, tag = 'scoped memory for tpu_custom_call.1']
    #allocation4 [shape = 's32[2]{0}', space=sflag, size = 0x8, scoped, tag = 'scoped memory for tpu_custom_call.1']
    #allocation5 [shape = 'u8[131072]{0}', space=vmem, size = 0x20000, scoped, tag = 'input window, operand 1']
    #allocation6 [shape = 's32[2]{0}', space=sflag, size = 0x8, scoped, tag = 'scoped memory for tpu_custom_call.1']
    #allocation7 [shape = 'u8[4096]{0}', space=vmem, size = 0x1000, scoped, tag = 'input window, operand 2']
    #allocation8 [shape = 'u8[131072]{0}', space=vmem, size = 0x20000, scoped, tag = 'output window, operand 0']
    %8 = vsyncpa [#allocation3], 0
    %9 = vsyncpa [#allocation6], 0
    %s10 = scalar_lea.sflag [#allocation6], 1
    %11 = vsyncpa %s10, 0
    %12 = vsyncpa [#allocation4], 0
    %s13 = scalar_lea.sflag [#allocation4], 1
    %14 = vsyncpa %s13, 0
    loop: start=0, step=1, limit=4
    $region2: #{tpu_custom_call.1} parent=1 // loop_pre_header
      _
    $region3: #{tpu_custom_call.1} parent=1 // loop_header
      %s16 = sphi 0, %s20
      %p17 = scmp.ge.s32.totalorder %s16, 4
      %s23 = sphi 0, %s35
      %s24 = sphi 0, %s31
      %s25 = sphi 0, %s23
      %s26 = sphi 0, %s24
      %s27 = sphi 0, %s25
      %s28 = sphi 0, %s26
      %s38 = sphi 0, %s40
      %s41 = sphi 0, %s38
      %s42 = sphi 0, %s41
      %s58 = sphi 0, %s42
      %s64 = sphi 0, %s66
      %s67 = sphi 0, %s64
      %s68 = sphi 0, %s67
      %s84 = sphi 0, %s68
      %s90 = sphi 0, %s92
      %s93 = sphi 0, %s90
      %s94 = sphi 0, %s93
      %s110 = sphi 0, %s94
      %s118 = sphi 0, %s120
      %s121 = sphi 0, %s118
      %s122 = sphi 0, %s121
      %s138 = sphi 0, %s122
    $region4: #{tpu_custom_call.1} parent=1 // loop_header_branch
      %19 = sbr.rel (%p17) target = $region8
    $region5: #{tpu_custom_call.1} parent=1 // loop_body
      %s21 = ssub.s32 %s16, 1
      %s22 = ssub.s32 %s16, 2
      %s29 = sadd.s32 1, %s24
      %p30 = scmp.ge.s32.totalorder %s29, 2
      %s31 = scalar_select %p30, 0, %s29
      %s32 = sadd.s32 1, %s23
      %s33 = scalar_select %p30, %s32, %s23
      %p34 = scmp.ge.s32.totalorder %s33, 1
      %s35 = scalar_select %p34, 0, %s33
      %s36 = ssub.s32 %s23, %s35
      %p37 = scmp.eq.s32.totalorder %s36, 0
      %s39 = sadd.s32 %s38, 1
      %s40 = scalar_select %p37, %s38, %s39
      %p43 = pneg %p37
      %p44 = scmp.eq.s32.totalorder %s16, 1
      %p45 = por %p43, %p44
      %p46 = scmp.ne.s32.totalorder %s38, %s41
      %p47 = scmp.eq.s32.totalorder %s16, 0
      %p48 = por %p46, %p47
      %p49 = scmp.ne.s32.totalorder %s38, %s41
      %p50 = scmp.eq.s32.totalorder %s21, 1
      %p51 = por %p49, %p50
      %p52 = scmp.ne.s32.totalorder %s41, %s42
      %p53 = scmp.eq.s32.totalorder %s21, 0
      %p54 = por %p52, %p53
      %p55 = scmp.ne.s32.totalorder %s41, %s42
      %p56 = scmp.eq.s32.totalorder %s22, 1
      %p57 = por %p55, %p56
      %p59 = scmp.ne.s32.totalorder %s42, %s58
      %p60 = scmp.eq.s32.totalorder %s22, 0
      %p61 = por %p59, %p60
      %s62 = ssub.s32 %s24, %s31
      %p63 = scmp.eq.s32.totalorder %s62, 0
      %s65 = sadd.s32 %s64, 1
      %s66 = scalar_select %p63, %s64, %s65
      %p69 = pneg %p63
      %p70 = scmp.eq.s32.totalorder %s16, 1
      %p71 = por %p69, %p70
      %p72 = scmp.ne.s32.totalorder %s64, %s67
      %p73 = scmp.eq.s32.totalorder %s16, 0
      %p74 = por %p72, %p73
      %p75 = scmp.ne.s32.totalorder %s64, %s67
      %p76 = scmp.eq.s32.totalorder %s21, 1
      %p77 = por %p75, %p76
      %p78 = scmp.ne.s32.totalorder %s67, %s68
      %p79 = scmp.eq.s32.totalorder %s21, 0
      %p80 = por %p78, %p79
      %p81 = scmp.ne.s32.totalorder %s67, %s68
      %p82 = scmp.eq.s32.totalorder %s22, 1
      %p83 = por %p81, %p82
      %p85 = scmp.ne.s32.totalorder %s68, %s84
      %p86 = scmp.eq.s32.totalorder %s22, 0
      %p87 = por %p85, %p86
      %s88 = ssub.s32 %s24, %s31
      %p89 = scmp.eq.s32.totalorder %s88, 0
      %s91 = sadd.s32 %s90, 1
      %s92 = scalar_select %p89, %s90, %s91
      %p95 = pneg %p89
      %p96 = scmp.eq.s32.totalorder %s16, 1
      %p97 = por %p95, %p96
      %p98 = scmp.ne.s32.totalorder %s90, %s93
      %p99 = scmp.eq.s32.totalorder %s16, 0
      %p100 = por %p98, %p99
      %p101 = scmp.ne.s32.totalorder %s90, %s93
      %p102 = scmp.eq.s32.totalorder %s21, 1
      %p103 = por %p101, %p102
      %p104 = scmp.ne.s32.totalorder %s93, %s94
      %p105 = scmp.eq.s32.totalorder %s21, 0
      %p106 = por %p104, %p105
      %p107 = scmp.ne.s32.totalorder %s93, %s94
      %p108 = scmp.eq.s32.totalorder %s22, 1
      %p109 = por %p107, %p108
      %p111 = scmp.ne.s32.totalorder %s94, %s110
      %p112 = scmp.eq.s32.totalorder %s22, 0
      %p113 = por %p111, %p112
      %s114 = ssub.s32 %s23, %s35
      %s115 = ssub.s32 %s24, %s31
      %s116 = sor.u32 %s114, %s115
      %p117 = scmp.eq.s32.totalorder %s116, 0
      %s119 = sadd.s32 %s118, 1
      %s120 = scalar_select %p117, %s118, %s119
      %p123 = pneg %p117
      %p124 = scmp.eq.s32.totalorder %s16, 1
      %p125 = por %p123, %p124
      %p126 = scmp.ne.s32.totalorder %s118, %s121
      %p127 = scmp.eq.s32.totalorder %s16, 0
      %p128 = por %p126, %p127
      %p129 = scmp.ne.s32.totalorder %s118, %s121
      %p130 = scmp.eq.s32.totalorder %s21, 1
      %p131 = por %p129, %p130
      %p132 = scmp.ne.s32.totalorder %s121, %s122
      %p133 = scmp.eq.s32.totalorder %s21, 0
      %p134 = por %p132, %p133
      %p135 = scmp.ne.s32.totalorder %s121, %s122
      %p136 = scmp.eq.s32.totalorder %s22, 1
      %p137 = por %p135, %p136
      %p139 = scmp.ne.s32.totalorder %s122, %s138
      %p140 = scmp.eq.s32.totalorder %s22, 0
      %p141 = por %p139, %p140
      %p142 = scmp.le.s32.totalorder 1, %s16
      %p143 = scmp.lt.s32.totalorder %s16, 3
      %p144 = pnand %p142, %p143
      %p145 = pneg %p144
      // Predicated region
      $region9: #{tpu_custom_call.1} parent=5 // pred_check
        _
      $region10: #{tpu_custom_call.1} parent=5 // pred_check_branch
        %147 = sbr.rel (%p144) target = $region12
      $region11: #{tpu_custom_call.1} parent=5 // pred_region
        %s148 = ssub.s32 %s16, 1
        // Predicated region
        $region13: #{tpu_custom_call.1} parent=11 // pred_check
          %p149 = pneg %p54
        $region14: #{tpu_custom_call.1} parent=11 // pred_check_branch
          %151 = sbr.rel (%p149) target = $region16
        $region15: #{tpu_custom_call.1} parent=11 // pred_region
          %s152 = smul.u32 8, %s25
          %154 = vsyncadd [#allocation3], 0
          %s155 = smul.addr %s152, 4
          %s156 = scalar_lea.hbm %s0, %s155
          %s157 = sshll.u32 %s156, 4
          %s158 = int_to_ptr.hbm [resolvable:$true] %s157
          %s159 = sshll.u32 [#allocation2], 4
          %s160 = int_to_ptr.vmem [resolvable:$true] %s159
          %165 = dma.hbm_to_vmem [thread:$0]  %s158, 512, %s160, [#allocation3], 64, 64, 4
        $region16: #{tpu_custom_call.1} parent=11 // pred_fallthru
          _
      $region12: #{tpu_custom_call.1} parent=5 // pred_fallthru
        _
      %p166 = scmp.lt.s32.totalorder %s16, 2
      // Predicated region
      $region17: #{tpu_custom_call.1} parent=5 // pred_check
        %p167 = pneg %p166
      $region18: #{tpu_custom_call.1} parent=5 // pred_check_branch
        %169 = sbr.rel (%p167) target = $region20
      $region19: #{tpu_custom_call.1} parent=5 // pred_region
        // Predicated region
        $region21: #{tpu_custom_call.1} parent=19 // pred_check
          %p170 = pneg %p74
        $region22: #{tpu_custom_call.1} parent=19 // pred_check_branch
          %172 = sbr.rel (%p170) target = $region24
        $region23: #{tpu_custom_call.1} parent=19 // pred_region
          %s173 = sand.u32 %s16, 1
          %s174 = scalar_lea.sflag [#allocation6], %s173
          %s175 = sand.u32 %s64, 1
          %s176 = smul.addr %s175, 128
          %s177 = scalar_lea.vmem [#allocation5], %s176
          %s178 = smul.u32 4, %s24
          %180 = vsyncadd %s174, 0
          %s181 = smul.addr %s178, 4
          %s182 = scalar_lea.hbm %s1, %s181
          %s183 = sshll.u32 %s182, 4
          %s184 = int_to_ptr.hbm [resolvable:$true] %s183
          %s185 = sshll.u32 %s177, 4
          %s186 = int_to_ptr.vmem [resolvable:$true] %s185
          %191 = dma.hbm_to_vmem [thread:$0]  %s184, 2048, %s186, %s174, 512, 256, 16
        $region24: #{tpu_custom_call.1} parent=19 // pred_fallthru
          _
        // Predicated region
        $region25: #{tpu_custom_call.1} parent=19 // pred_check
          %p192 = pneg %p100
        $region26: #{tpu_custom_call.1} parent=19 // pred_check_branch
          %194 = sbr.rel (%p192) target = $region28
        $region27: #{tpu_custom_call.1} parent=19 // pred_region
          %s195 = sand.u32 %s16, 1
          %s196 = scalar_lea.sflag [#allocation6], %s195
          %s197 = sand.u32 %s90, 1
          %s198 = smul.addr %s197, 4
          %s199 = scalar_lea.vmem [#allocation7], %s198
          %s200 = smul.u32 4, %s24
          %202 = vsyncadd %s196, 0
          %s203 = scalar_lea.hbm %s2, %s200
          %s205 = sshll.u32 %s203, 4
          %s206 = int_to_ptr.hbm [resolvable:$true] %s205
          %s207 = sshll.u32 %s199, 4
          %s208 = int_to_ptr.vmem [resolvable:$true] %s207
          %210 = dma.hbm_to_vmem [thread:$0]  %s206, 64, %s208, %s196
        $region28: #{tpu_custom_call.1} parent=19 // pred_fallthru
          _
      $region20: #{tpu_custom_call.1} parent=5 // pred_fallthru
        _
      %p211 = scmp.le.s32.totalorder 1, %s16
      %p212 = scmp.lt.s32.totalorder %s16, 3
      %p213 = pnand %p211, %p212
      %p214 = pneg %p213
      // Predicated region
      $region29: #{tpu_custom_call.1} parent=5 // pred_check
        _
      $region30: #{tpu_custom_call.1} parent=5 // pred_check_branch
        %216 = sbr.rel (%p213) target = $region32
      $region31: #{tpu_custom_call.1} parent=5 // pred_region
        %s217 = ssub.s32 %s16, 1
        // Predicated region
        $region33: #{tpu_custom_call.1} parent=31 // pred_check
          %p218 = pneg %p54
        $region34: #{tpu_custom_call.1} parent=31 // pred_check_branch
          %220 = sbr.rel (%p218) target = $region36
        $region35: #{tpu_custom_call.1} parent=31 // pred_region
          %222 = dma.done [#allocation3], 512
        $region36: #{tpu_custom_call.1} parent=31 // pred_fallthru
          _
        %s223 = sand.u32 %s21, 1
        %s224 = scalar_lea.sflag [#allocation6], %s223
        %s225 = sand.u32 %s67, 1
        %s226 = smul.addr %s225, 128
        %s227 = scalar_lea.vmem [#allocation5], %s226
        // Predicated region
        $region37: #{tpu_custom_call.1} parent=31 // pred_check
          %p228 = pneg %p80
        $region38: #{tpu_custom_call.1} parent=31 // pred_check_branch
          %230 = sbr.rel (%p228) target = $region40
        $region39: #{tpu_custom_call.1} parent=31 // pred_region
          %232 = dma.done %s224, 2048
        $region40: #{tpu_custom_call.1} parent=31 // pred_fallthru
          _
        %s233 = sand.u32 %s21, 1
        %s234 = scalar_lea.sflag [#allocation6], %s233
        %s235 = sand.u32 %s93, 1
        %s236 = smul.addr %s235, 4
        %s237 = scalar_lea.vmem [#allocation7], %s236
        // Predicated region
        $region41: #{tpu_custom_call.1} parent=31 // pred_check
          %p238 = pneg %p106
        $region42: #{tpu_custom_call.1} parent=31 // pred_check_branch
          %240 = sbr.rel (%p238) target = $region44
        $region43: #{tpu_custom_call.1} parent=31 // pred_region
          %242 = dma.done %s234, 64
        $region44: #{tpu_custom_call.1} parent=31 // pred_fallthru
          _
        %p243 = pneg %p54
        %p244 = pneg %p51
        %s245 = sand.u32 %s21, 1
        %s246 = scalar_lea.sflag [#allocation6], %s245
        %s247 = sand.u32 %s67, 1
        %s248 = smul.addr %s247, 128
        %s249 = scalar_lea.vmem [#allocation5], %s248
        %p250 = pneg %p80
        %p251 = pneg %p77
        %s252 = sand.u32 %s21, 1
        %s253 = scalar_lea.sflag [#allocation6], %s252
        %s254 = sand.u32 %s93, 1
        %s255 = smul.addr %s254, 4
        %s256 = scalar_lea.vmem [#allocation7], %s255
        %p257 = pneg %p106
        %p258 = pneg %p103
        %p259 = pneg %p134
        %p260 = pneg %p131
        %s261 = sand.u32 %s121, 1
        %s262 = scalar_lea.sflag [#allocation4], %s261
        %s263 = sand.u32 %s121, 1
        %s264 = smul.addr %s263, 128
        %s265 = scalar_lea.vmem [#allocation8], %s264
        %s266 = smul.u32 8, %s25
        %s267 = smul.u32 4, %s26
        %s268 = smul.u32 4, %s26
        %s269 = smul.u32 8, %s25
        %s270 = smul.u32 4, %s26
        %v272 = vld [vmem:[#allocation2] sm:$0xf]
        %v273 = vld [vmem:[#allocation2 + $0x4] sm:$0xf]
        %v274 = vld [vmem:[#allocation2 + $0x8] sm:$0xf]
        %v275 = vld [vmem:[#allocation2 + $0xc] sm:$0xf]
        %v276 = vld [vmem:[#allocation2 + $0x10] sm:$0xf]
        %v277 = vld [vmem:[#allocation2 + $0x14] sm:$0xf]
        %v278 = vld [vmem:[#allocation2 + $0x18] sm:$0xf]
        %v279 = vld [vmem:[#allocation2 + $0x1c] sm:$0xf]
        %v280 = vld [vmem:[%s227] sm:$0xff]
        %v281 = vld [vmem:[%s227 + $0x8] sm:$0xff]
        %v282 = vld [vmem:[%s227 + $0x10] sm:$0xff]
        %v283 = vld [vmem:[%s227 + $0x18] sm:$0xff]
        %v284 = vld [vmem:[%s227 + $0x20] sm:$0xff]
        %v285 = vld [vmem:[%s227 + $0x28] sm:$0xff]
        %v286 = vld [vmem:[%s227 + $0x30] sm:$0xff]
        %v287 = vld [vmem:[%s227 + $0x38] sm:$0xff]
        %v288 = vld [vmem:[%s227 + $0x40] sm:$0xff]
        %v289 = vld [vmem:[%s227 + $0x48] sm:$0xff]
        %v290 = vld [vmem:[%s227 + $0x50] sm:$0xff]
        %v291 = vld [vmem:[%s227 + $0x58] sm:$0xff]
        %v292 = vld [vmem:[%s227 + $0x60] sm:$0xff]
        %v293 = vld [vmem:[%s227 + $0x68] sm:$0xff]
        %v294 = vld [vmem:[%s227 + $0x70] sm:$0xff]
        %v295 = vld [vmem:[%s227 + $0x78] sm:$0xff]
        %v296 = vld [vmem:[%s237] sm:$0xf]
        %v298 = vperm.slane %v296, 0
        %v299 = vperm.slane %v296, 1
        %v300 = vperm.slane %v296, 2
        %v301 = vperm.slane %v296, 3
        %v314 = vunpack.c.l.b16 %v272
        %v315 = vunpack.c.l.b16 %v273
        %v316 = vunpack.c.l.b16 %v274
        %v317 = vunpack.c.l.b16 %v275
        %v318 = vunpack.c.l.b16 %v276
        %v319 = vunpack.c.l.b16 %v277
        %v320 = vunpack.c.l.b16 %v278
        %v321 = vunpack.c.l.b16 %v279
        %v322 = vpack.c.b16 %v315, %v314
        %v323 = vpack.c.b16 %v317, %v316
        %v324 = vpack.c.b16 %v319, %v318
        %v325 = vpack.c.b16 %v321, %v320
        %v342 = vunpack.c.l.b16 %v280
        %v343 = vunpack.c.h.b16 %v280
        %v344 = vunpack.c.l.b16 %v281
        %v345 = vunpack.c.h.b16 %v281
        %v346 = vunpack.c.l.b16 %v282
        %v347 = vunpack.c.h.b16 %v282
        %v348 = vunpack.c.l.b16 %v283
        %v349 = vunpack.c.h.b16 %v283
        %v350 = vunpack.c.l.b16 %v284
        %v351 = vunpack.c.h.b16 %v284
        %v352 = vunpack.c.l.b16 %v285
        %v353 = vunpack.c.h.b16 %v285
        %v354 = vunpack.c.l.b16 %v286
        %v355 = vunpack.c.h.b16 %v286
        %v356 = vunpack.c.l.b16 %v287
        %v357 = vunpack.c.h.b16 %v287
        %v358 = vunpack.c.l.b16 %v288
        %v359 = vunpack.c.h.b16 %v288
        %v360 = vunpack.c.l.b16 %v289
        %v361 = vunpack.c.h.b16 %v289
        %v362 = vunpack.c.l.b16 %v290
        %v363 = vunpack.c.h.b16 %v290
        %v364 = vunpack.c.l.b16 %v291
        %v365 = vunpack.c.h.b16 %v291
        %v366 = vunpack.c.l.b16 %v292
        %v367 = vunpack.c.h.b16 %v292
        %v368 = vunpack.c.l.b16 %v293
        %v369 = vunpack.c.h.b16 %v293
        %v370 = vunpack.c.l.b16 %v294
        %v371 = vunpack.c.h.b16 %v294
        %v372 = vunpack.c.l.b16 %v295
        %v373 = vunpack.c.h.b16 %v295
        %v374 = vpack.c.b16 %v346, %v342
        %v375 = vpack.c.b16 %v347, %v343
        %v376 = vpack.c.b16 %v348, %v344
        %v377 = vpack.c.b16 %v349, %v345
        %v378 = vpack.c.b16 %v354, %v350
        %v379 = vpack.c.b16 %v355, %v351
        %v380 = vpack.c.b16 %v356, %v352
        %v381 = vpack.c.b16 %v357, %v353
        %v382 = vpack.c.b16 %v362, %v358
        %v383 = vpack.c.b16 %v363, %v359
        %v384 = vpack.c.b16 %v364, %v360
        %v385 = vpack.c.b16 %v365, %v361
        %v386 = vpack.c.b16 %v370, %v366
        %v387 = vpack.c.b16 %v371, %v367
        %v388 = vpack.c.b16 %v372, %v368
        %v389 = vpack.c.b16 %v373, %v369
        %vm406 = vcmask 523264
        %v408 = vsel %vm406, %v322, 0
        %v411 = vsel %vm406, %v323, 0
        %v414 = vsel %vm406, %v324, 0
        %v417 = vsel %vm406, %v325, 0
        %419 = vmatpush.bf16.msra.mxu0 0
        %420 = vmatpush.bf16.msra.mxu0 0
        %421 = vmatpush.bf16.msra.mxu0 0
        %422 = vmatpush.bf16.msra.mxu0 0
        %423 = vmatpush.bf16.msra.mxu0 %v386
        %424 = vmatpush.bf16.msra.mxu0 %v382
        %425 = vmatpush.bf16.msra.mxu0 %v378
        %426 = vmatpush.bf16.msra.mxu0 %v374
        %427 = vmatmul.bf16.gmra.mxu0 %v408
        %v428 = vpop.f32.mrf.mxu0
        %v429 = vadd.f32 %v298, %v428
        %v430 = vpop.f32.mrf.mxu0
        %v431 = vadd.f32 %v298, %v430
        %432 = vmatmul.bf16.gmra.mxu0 %v411
        %v433 = vpop.f32.mrf.mxu0
        %v434 = vadd.f32 %v298, %v433
        %v435 = vpop.f32.mrf.mxu0
        %v436 = vadd.f32 %v298, %v435
        %437 = vmatmul.bf16.gmra.mxu0 %v414
        %v438 = vpop.f32.mrf.mxu0
        %v439 = vadd.f32 %v298, %v438
        %v440 = vpop.f32.mrf.mxu0
        %v441 = vadd.f32 %v298, %v440
        %442 = vmatmul.bf16.gmra.mxu0 %v417
        %v443 = vpop.f32.mrf.mxu0
        %v444 = vadd.f32 %v298, %v443
        %v445 = vpop.f32.mrf.mxu0
        %v446 = vadd.f32 %v298, %v445
        %447 = vdwg.mxu0
        %448 = vmatpush.bf16.msra.mxu0 0
        %449 = vmatpush.bf16.msra.mxu0 0
        %450 = vmatpush.bf16.msra.mxu0 0
        %451 = vmatpush.bf16.msra.mxu0 0
        %452 = vmatpush.bf16.msra.mxu0 %v387
        %453 = vmatpush.bf16.msra.mxu0 %v383
        %454 = vmatpush.bf16.msra.mxu0 %v379
        %455 = vmatpush.bf16.msra.mxu0 %v375
        %456 = vmatmul.bf16.gmra.mxu0 %v408
        %v457 = vpop.f32.mrf.mxu0
        %v458 = vadd.f32 %v299, %v457
        %v459 = vpop.f32.mrf.mxu0
        %v460 = vadd.f32 %v299, %v459
        %461 = vmatmul.bf16.gmra.mxu0 %v411
        %v462 = vpop.f32.mrf.mxu0
        %v463 = vadd.f32 %v299, %v462
        %v464 = vpop.f32.mrf.mxu0
        %v465 = vadd.f32 %v299, %v464
        %466 = vmatmul.bf16.gmra.mxu0 %v414
        %v467 = vpop.f32.mrf.mxu0
        %v468 = vadd.f32 %v299, %v467
        %v469 = vpop.f32.mrf.mxu0
        %v470 = vadd.f32 %v299, %v469
        %471 = vmatmul.bf16.gmra.mxu0 %v417
        %v472 = vpop.f32.mrf.mxu0
        %v473 = vadd.f32 %v299, %v472
        %v474 = vpop.f32.mrf.mxu0
        %v475 = vadd.f32 %v299, %v474
        %476 = vdwg.mxu0
        %477 = vmatpush.bf16.msra.mxu0 0
        %478 = vmatpush.bf16.msra.mxu0 0
        %479 = vmatpush.bf16.msra.mxu0 0
        %480 = vmatpush.bf16.msra.mxu0 0
        %481 = vmatpush.bf16.msra.mxu0 %v388
        %482 = vmatpush.bf16.msra.mxu0 %v384
        %483 = vmatpush.bf16.msra.mxu0 %v380
        %484 = vmatpush.bf16.msra.mxu0 %v376
        %485 = vmatmul.bf16.gmra.mxu0 %v408
        %v486 = vpop.f32.mrf.mxu0
        %v487 = vadd.f32 %v300, %v486
        %v488 = vpop.f32.mrf.mxu0
        %v489 = vadd.f32 %v300, %v488
        %490 = vmatmul.bf16.gmra.mxu0 %v411
        %v491 = vpop.f32.mrf.mxu0
        %v492 = vadd.f32 %v300, %v491
        %v493 = vpop.f32.mrf.mxu0
        %v494 = vadd.f32 %v300, %v493
        %495 = vmatmul.bf16.gmra.mxu0 %v414
        %v496 = vpop.f32.mrf.mxu0
        %v497 = vadd.f32 %v300, %v496
        %v498 = vpop.f32.mrf.mxu0
        %v499 = vadd.f32 %v300, %v498
        %500 = vmatmul.bf16.gmra.mxu0 %v417
        %v501 = vpop.f32.mrf.mxu0
        %v502 = vadd.f32 %v300, %v501
        %v503 = vpop.f32.mrf.mxu0
        %v504 = vadd.f32 %v300, %v503
        %505 = vdwg.mxu0
        %506 = vmatpush.bf16.msra.mxu0 0
        %507 = vmatpush.bf16.msra.mxu0 0
        %508 = vmatpush.bf16.msra.mxu0 0
        %509 = vmatpush.bf16.msra.mxu0 0
        %510 = vmatpush.bf16.msra.mxu0 %v389
        %511 = vmatpush.bf16.msra.mxu0 %v385
        %512 = vmatpush.bf16.msra.mxu0 %v381
        %513 = vmatpush.bf16.msra.mxu0 %v377
        %514 = vmatmul.bf16.gmra.mxu0 %v408
        %v515 = vpop.f32.mrf.mxu0
        %v516 = vadd.f32 %v301, %v515
        %v517 = vpop.f32.mrf.mxu0
        %v518 = vadd.f32 %v301, %v517
        %519 = vmatmul.bf16.gmra.mxu0 %v411
        %v520 = vpop.f32.mrf.mxu0
        %v521 = vadd.f32 %v301, %v520
        %v522 = vpop.f32.mrf.mxu0
        %v523 = vadd.f32 %v301, %v522
        %524 = vmatmul.bf16.gmra.mxu0 %v414
        %v525 = vpop.f32.mrf.mxu0
        %v526 = vadd.f32 %v301, %v525
        %v527 = vpop.f32.mrf.mxu0
        %v528 = vadd.f32 %v301, %v527
        %529 = vmatmul.bf16.gmra.mxu0 %v417
        %v530 = vpop.f32.mrf.mxu0
        %v531 = vadd.f32 %v301, %v530
        %v532 = vpop.f32.mrf.mxu0
        %v533 = vadd.f32 %v301, %v532
        %534 = vdwg.mxu0
        %v535 = vpack.c.bf16 %v458, %v429
        %v536 = vpack.c.bf16 %v516, %v487
        %v537 = vpack.c.bf16 %v460, %v431
        %v538 = vpack.c.bf16 %v518, %v489
        %v539 = vpack.c.bf16 %v463, %v434
        %v540 = vpack.c.bf16 %v521, %v492
        %v541 = vpack.c.bf16 %v465, %v436
        %v542 = vpack.c.bf16 %v523, %v494
        %v543 = vpack.c.bf16 %v468, %v439
        %v544 = vpack.c.bf16 %v526, %v497
        %v545 = vpack.c.bf16 %v470, %v441
        %v546 = vpack.c.bf16 %v528, %v499
        %v547 = vpack.c.bf16 %v473, %v444
        %v548 = vpack.c.bf16 %v531, %v502
        %v549 = vpack.c.bf16 %v475, %v446
        %v550 = vpack.c.bf16 %v533, %v504
        %551 = vst [vmem:[%s265] sm:$0xff] %v535
        %552 = vst [vmem:[%s265 + $0x8] sm:$0xff] %v536
        %553 = vst [vmem:[%s265 + $0x10] sm:$0xff] %v537
        %554 = vst [vmem:[%s265 + $0x18] sm:$0xff] %v538
        %555 = vst [vmem:[%s265 + $0x20] sm:$0xff] %v539
        %556 = vst [vmem:[%s265 + $0x28] sm:$0xff] %v540
        %557 = vst [vmem:[%s265 + $0x30] sm:$0xff] %v541
        %558 = vst [vmem:[%s265 + $0x38] sm:$0xff] %v542
        %559 = vst [vmem:[%s265 + $0x40] sm:$0xff] %v543
        %560 = vst [vmem:[%s265 + $0x48] sm:$0xff] %v544
        %561 = vst [vmem:[%s265 + $0x50] sm:$0xff] %v545
        %562 = vst [vmem:[%s265 + $0x58] sm:$0xff] %v546
        %563 = vst [vmem:[%s265 + $0x60] sm:$0xff] %v547
        %564 = vst [vmem:[%s265 + $0x68] sm:$0xff] %v548
        %565 = vst [vmem:[%s265 + $0x70] sm:$0xff] %v549
        %566 = vst [vmem:[%s265 + $0x78] sm:$0xff] %v550
        %s567 = sand.u32 %s121, 1
        %s568 = scalar_lea.sflag [#allocation4], %s567
        %s569 = sand.u32 %s121, 1
        %s570 = smul.addr %s569, 128
        %s571 = scalar_lea.vmem [#allocation8], %s570
        // Predicated region
        $region45: #{tpu_custom_call.1} parent=31 // pred_check
          %p572 = pneg %p131
        $region46: #{tpu_custom_call.1} parent=31 // pred_check_branch
          %574 = sbr.rel (%p572) target = $region48
        $region47: #{tpu_custom_call.1} parent=31 // pred_region
          %s575 = smul.u32 8, %s25
          %s576 = smul.u32 4, %s26
          %578 = vsyncadd %s568, 0
          %s579 = smul.addr %s575, 8
          %s580 = sadd.s32 %s576, %s579
          %s581 = smul.addr %s580, 4
          %s582 = scalar_lea.hbm %s3, %s581
          %s583 = sshll.u32 %s571, 4
          %s584 = int_to_ptr.vmem [resolvable:$true] %s583
          %s585 = sshll.u32 %s582, 4
          %s586 = int_to_ptr.hbm [resolvable:$true] %s585
          %591 = dma.vmem_to_hbm [thread:$0]  %s584, 2048, %s586, %s568, 256, 512, 16
        $region48: #{tpu_custom_call.1} parent=31 // pred_fallthru
          _
      $region32: #{tpu_custom_call.1} parent=5 // pred_fallthru
        _
      %p592 = scmp.le.s32.totalorder 2, %s16
      // Predicated region
      $region49: #{tpu_custom_call.1} parent=5 // pred_check
        %p593 = pneg %p592
      $region50: #{tpu_custom_call.1} parent=5 // pred_check_branch
        %595 = sbr.rel (%p593) target = $region52
      $region51: #{tpu_custom_call.1} parent=5 // pred_region
        %s596 = ssub.s32 %s16, 2
        // Predicated region
        $region53: #{tpu_custom_call.1} parent=51 // pred_check
          %p597 = pneg %p137
        $region54: #{tpu_custom_call.1} parent=51 // pred_check_branch
          %599 = sbr.rel (%p597) target = $region56
        $region55: #{tpu_custom_call.1} parent=51 // pred_region
          %s600 = sand.u32 %s122, 1
          %s601 = scalar_lea.sflag [#allocation4], %s600
          %s602 = sand.u32 %s122, 1
          %s603 = smul.addr %s602, 128
          %s604 = scalar_lea.vmem [#allocation8], %s603
          %606 = dma.done %s601, 2048
        $region56: #{tpu_custom_call.1} parent=51 // pred_fallthru
          _
      $region52: #{tpu_custom_call.1} parent=5 // pred_fallthru
        _
    $region6: #{tpu_custom_call.1} parent=1 // loop_footer
      %s20 = sadd.s32 1, %s16
    $region7: #{tpu_custom_call.1} parent=1 // loop_footer_branch
      %15 = sbr.rel target = $region3
    $region8: #{tpu_custom_call.1} parent=1 // loop_exit
      _
    %607 = vsyncpa [#allocation3], 1
    %s608 = scalar_lea.sflag [#allocation3], 1
    %609 = vsyncpa %s608, 1
    %610 = vsyncpa [#allocation6], 1
    %s611 = scalar_lea.sflag [#allocation6], 1
    %612 = vsyncpa %s611, 1
    %613 = vsyncpa [#allocation4], 1
    %s614 = scalar_lea.sflag [#allocation4], 1
    %615 = vsyncpa %s614, 1

</llo_original>
